<compile_context>
chip_gen: v7x
topology: tpu7x:2x2x1
jax: 0.10.0
libtpu: 0.0.40
codegen_flags: <defaults>
</compile_context>

<pallas_src>
import functools

import jax
import jax.numpy as jnp
from jax.experimental import pallas as pl
from jax.experimental.pallas import tpu as pltpu


# --------------------------------------------------------------------------------------
# Kernels
# --------------------------------------------------------------------------------------
def _make_label_kernel(C):
    """Integer-label targets.  p_ref (1,C,S,128), lbl_ref (1,S,128) int8/int32."""

    def kernel(p_ref, lbl_ref, dice_ref, ce_ref, e_scr):
        ti = pl.program_id(1)

        @pl.when(ti == 0)
        def _():
            dice_ref[...] = jnp.zeros_like(dice_ref)
            ce_ref[...] = jnp.zeros_like(ce_ref)

        lbl = lbl_ref[0].astype(jnp.int32)          # widen once (int8 HBM traffic)

        # ---- pass A: running max over class planes (native dtype, VPU only) ----
        m = p_ref[0, 0]
        for c in range(1, C):
            m = jnp.maximum(m, p_ref[0, c])
        m = m.astype(jnp.float32)

        # ---- pass B: e_c = exp(p_c - m) -> scratch; z = sum_c e_c.
        #      CE label term and dice tsum folded here (p_c already loaded/upcast). ----
        z = jnp.zeros_like(m)
        ce_lbl = jnp.zeros((1, 128), jnp.float32)
        tsum_rows = []
        for c in range(C):
            pc = p_ref[0, c].astype(jnp.float32)
            tc = (lbl == c).astype(jnp.float32)     # one-hot mask rebuilt from labels
            e = jnp.exp(pc - m)
            e_scr[c] = e
            z = z + e
            ce_lbl = ce_lbl + jnp.sum(tc * pc, axis=0, keepdims=True)
            tsum_rows.append(jnp.sum(tc, axis=0, keepdims=True))

        lse = m + jnp.log(z)                        # logsumexp
        inv_z = pl.reciprocal(z, approx=False)      # exact; one recip replaces C exps
        ce_lanes = jnp.sum(lse, axis=0, keepdims=True) - ce_lbl

        # ---- pass C: softmax prob = e_c * inv_z (no second exp, no divide) ----
        num_rows, ssum_rows = [], []
        for c in range(C):
            sc = e_scr[c] * inv_z
            tc = (lbl == c).astype(jnp.float32)     # cheap recomputed mask
            num_rows.append(jnp.sum(sc * tc, axis=0, keepdims=True))
            ssum_rows.append(jnp.sum(sc, axis=0, keepdims=True))

        num = jnp.concatenate(num_rows, axis=0)     # (C, 128)
        ssum = jnp.concatenate(ssum_rows, axis=0)
        tsum = jnp.concatenate(tsum_rows, axis=0)
        dice_ref[0] += jnp.stack([num, ssum, tsum], axis=0)   # single RMW per step
        ce_ref[0] += ce_lanes

    return kernel


def _make_dense_kernel(C):
    """Dense (one-hot / soft) targets.  p_ref (1,C,S,128), t_ref (1,C,S,128).
    CE uses argmax(target) (tracked in pass A), dice uses the dense target directly,
    matching the PyTorch module."""

    def kernel(p_ref, t_ref, dice_ref, ce_ref, e_scr):
        ti = pl.program_id(1)

        @pl.when(ti == 0)
        def _():
            dice_ref[...] = jnp.zeros_like(dice_ref)
            ce_ref[...] = jnp.zeros_like(ce_ref)

        # ---- pass A: running max of p; track p[argmax(t)] (first-max semantics) ----
        m = p_ref[0, 0]
        tmax = t_ref[0, 0]
        plab = p_ref[0, 0]
        for c in range(1, C):
            pc = p_ref[0, c]
            tc = t_ref[0, c]
            m = jnp.maximum(m, pc)
            take = tc > tmax
            tmax = jnp.where(take, tc, tmax)
            plab = jnp.where(take, pc, plab)
        m = m.astype(jnp.float32)
        plab = plab.astype(jnp.float32)

        # ---- pass B: exp to scratch; z; dice tsum folded in ----
        z = jnp.zeros_like(m)
        tsum_rows = []
        for c in range(C):
            pc = p_ref[0, c].astype(jnp.float32)
            e = jnp.exp(pc - m)
            e_scr[c] = e
            z = z + e
            tsum_rows.append(
                jnp.sum(t_ref[0, c].astype(jnp.float32), axis=0, keepdims=True))

        lse = m + jnp.log(z)
        inv_z = pl.reciprocal(z, approx=False)
        ce_lanes = jnp.sum(lse - plab, axis=0, keepdims=True)

        # ---- pass C: softmax prob = e_c * inv_z; dice num / ssum ----
        num_rows, ssum_rows = [], []
        for c in range(C):
            sc = e_scr[c] * inv_z
            tc = t_ref[0, c].astype(jnp.float32)
            num_rows.append(jnp.sum(sc * tc, axis=0, keepdims=True))
            ssum_rows.append(jnp.sum(sc, axis=0, keepdims=True))

        num = jnp.concatenate(num_rows, axis=0)
        ssum = jnp.concatenate(ssum_rows, axis=0)
        tsum = jnp.concatenate(tsum_rows, axis=0)
        dice_ref[0] += jnp.stack([num, ssum, tsum], axis=0)
        ce_ref[0] += ce_lanes

    return kernel


# --------------------------------------------------------------------------------------
# Block-size selection
# --------------------------------------------------------------------------------------
_MAX_STEP_BYTES = 16 * 1024 * 1024   # pipelined (logits + target) bytes per grid step


def _pick_rows(R, cap_rows, align):
    """Largest multiple-of-`align` divisor of R that is <= cap_rows (0 if none).
    The full extent R is always a legal block regardless of alignment."""
    if R <= cap_rows:
        return R
    best = 0
    s = align
    while s <= cap_rows:
        if R % s == 0:
            best = s
        s += align
    return best


# --------------------------------------------------------------------------------------
# Wrapper
# --------------------------------------------------------------------------------------
@functools.partial(jax.jit, static_argnames=("diceloss_weight", "dice_bg_open",
                                             "dice_size_avg", "smooth"))
def segloss_2d(predict, target, *, diceloss_weight=0.5, dice_bg_open=True,
               dice_size_avg=True, smooth=1.0):
    """predict: (N, C, H, W) logits (f32 or bf16).
    target:  (N, C, H, W) one-hot / dense target  OR  (N, H, W) integer labels.
    Returns (loss, cc_loss, dice_loss)."""
    N, C, H, W = predict.shape
    HW = H * W
    assert HW % 128 == 0, "H*W must be a multiple of 128 for this kernel"
    R = HW // 128

    p = predict.reshape(N, C, R, 128)
    if p.dtype not in (jnp.bfloat16, jnp.float32):
        p = p.astype(jnp.float32)
    p_item = jnp.dtype(p.dtype).itemsize

    dense = (target.ndim == 4)
    if dense:
        assert target.shape == predict.shape
        t = target.reshape(N, C, R, 128)
        if t.dtype not in (jnp.bfloat16, jnp.float32):
            t = t.astype(jnp.float32)
        t_item = jnp.dtype(t.dtype).itemsize
        t_row = C * 128 * t_item
    else:
        assert target.shape == (N, H, W)
        t_item = 1                     # int8 labels assumed for the budget (tiny either way)
        t_row = 128

    # ---- generation-aware VMEM budget (64 MiB v7x, 128 MiB v5e/v6e) ----
    try:
        vmem_cap = int(pltpu.get_tpu_info().vmem_capacity_bytes)
    except Exception:
        vmem_cap = 64 * 1024 * 1024    # conservative default (v7x)
    budget = int(vmem_cap * 0.7)

    p_row = C * 128 * p_item
    scr_row = C * 128 * 4              # exp(p - m) scratch, f32
    per_row = 2 * (p_row + t_row) + scr_row   # double-buffered inputs + scratch
    cap_rows = max(8, min(budget // per_row, _MAX_STEP_BYTES // (p_row + t_row)))

    # dtype-aware row alignment: 32 (int8 label packing) -> 16 (bf16) -> 8 (f32)
    S_ROWS = _pick_rows(R, cap_rows, 32)
    if S_ROWS == 0:
        S_ROWS = _pick_rows(R, cap_rows, 16 if p_item == 2 else 8)
    if S_ROWS == 0:
        # TODO(synk): masked tail block instead of full-extent fallback (v7x VMEM risk).
        S_ROWS = R

    if not dense:
        use_i8 = (S_ROWS % 32 == 0 or S_ROWS == R) and C <= 127
        lbl_dtype = jnp.int8 if use_i8 else jnp.int32
        t = target.reshape(N, R, 128).astype(lbl_dtype)
        t_item = jnp.dtype(lbl_dtype).itemsize
        t_row = 128 * t_item

    n_row_blocks = R // S_ROWS
    # Spatial shard keeps both v7x TensorCores busy for N == 1 (harmless on 1-TC chips).
    # TODO(synk): odd n_row_blocks / explicit chip gating not handled (even split only).
    NS = 2 if (N == 1 and n_row_blocks >= 2 and n_row_blocks % 2 == 0) else 1
    n_inner = n_row_blocks // NS

    if NS == 1:
        p_map = lambda g, ti: (g, 0, ti, 0)
        td_map = lambda g, ti: (g, 0, ti, 0)
        l_map = lambda g, ti: (g, ti, 0)
    else:
        p_map = lambda g, ti: (g // NS, 0, (g % NS) * n_inner + ti, 0)
        td_map = lambda g, ti: (g // NS, 0, (g % NS) * n_inner + ti, 0)
        l_map = lambda g, ti: (g // NS, (g % NS) * n_inner + ti, 0)

    if dense:
        kernel = _make_dense_kernel(C)
        in_specs = [pl.BlockSpec((1, C, S_ROWS, 128), p_map),
                    pl.BlockSpec((1, C, S_ROWS, 128), td_map)]
    else:
        kernel = _make_label_kernel(C)
        in_specs = [pl.BlockSpec((1, C, S_ROWS, 128), p_map),
                    pl.BlockSpec((1, S_ROWS, 128), l_map)]

    p_block = C * S_ROWS * 128 * p_item
    t_block = (C if dense else 1) * S_ROWS * 128 * t_item
    scr_block = C * S_ROWS * 128 * 4
    out_block = (3 * C + 1) * 128 * 4
    needed = 2 * (p_block + t_block) + scr_block + 2 * out_block + (2 << 20)
    vmem_limit = int(min(int(0.9 * vmem_cap), max(16 << 20, needed)))

    cost = pl.CostEstimate(
        flops=int(N * HW * (12 * C + 6)),
        transcendentals=int(N * HW * (C + 2)),
        bytes_accessed=int(p.size * p_item + t.size * t_item
                           + N * NS * (3 * C + 1) * 128 * 4),
    )

    dice_acc, ce_acc = pl.pallas_call(
        kernel,
        out_shape=(
            jax.ShapeDtypeStruct((N * NS, 3, C, 128), jnp.float32),
            jax.ShapeDtypeStruct((N * NS, 1, 128), jnp.float32),
        ),
        grid_spec=pltpu.PrefetchScalarGridSpec(
            num_scalar_prefetch=0,
            grid=(N * NS, n_inner),
            in_specs=in_specs,
            out_specs=[
                pl.BlockSpec((1, 3, C, 128), lambda g, ti: (g, 0, 0, 0)),
                pl.BlockSpec((1, 1, 128), lambda g, ti: (g, 0, 0)),
            ],
            scratch_shapes=[pltpu.VMEM((C, S_ROWS, 128), jnp.float32)],
        ),
        compiler_params=pltpu.CompilerParams(
            dimension_semantics=("parallel", "arbitrary"),
            vmem_limit_bytes=vmem_limit),
        cost_estimate=cost,
    )(p, t)

    # ---- tiny epilogue in plain JAX (O(N*C) work) ----
    cc_loss = jnp.sum(ce_acc) / (N * HW)

    acc = dice_acc.reshape(N, NS, 3, C, 128).sum(axis=(1, 4))   # (N, 3, C)
    num, ssum, tsum = acc[:, 0], acc[:, 1], acc[:, 2]
    if not dice_bg_open:                 # optimize_bg=False -> drop background class 0
        num, ssum, tsum = num[:, 1:], ssum[:, 1:], tsum[:, 1:]

    dice = (2.0 * num + smooth) / (ssum + tsum + smooth)
    dice_loss_per = 1.0 - dice
    dice_loss = jnp.mean(dice_loss_per) if dice_size_avg else jnp.sum(dice_loss_per)

    loss = cc_loss * (1.0 - diceloss_weight) + dice_loss * diceloss_weight
    return loss, cc_loss, dice_loss


# --------------------------------------------------------------------------------------
# Pure-JAX reference (one-hot target) for verification
# --------------------------------------------------------------------------------------
def _segloss_2d_ref(predict, target, diceloss_weight=0.5, dice_bg_open=True,
                    dice_size_avg=True, smooth=1.0):
    p = predict.astype(jnp.float32)
    t = target.astype(jnp.float32)
    lse = jax.nn.logsumexp(p, axis=1)                       # (N, H, W)
    cc = jnp.mean(lse - jnp.sum(t * p, axis=1))
    s = jax.nn.softmax(p, axis=1)
    num = jnp.sum(s * t, axis=(2, 3))                       # (N, C)
    ssum = jnp.sum(s, axis=(2, 3))
    tsum = jnp.sum(t, axis=(2, 3))
    if not dice_bg_open:
        num, ssum, tsum = num[:, 1:], ssum[:, 1:], tsum[:, 1:]
    dice = (2.0 * num + smooth) / (ssum + tsum + smooth)
    dl = 1.0 - dice
    dice_loss = jnp.mean(dl) if dice_size_avg else jnp.sum(dl)
    loss = cc * (1.0 - diceloss_weight) + dice_loss * diceloss_weight
    return loss, cc, dice_loss


if __name__ == "__main__":
    key = jax.random.PRNGKey(0)
    k1, k2, k3, k4 = jax.random.split(key, 4)

    # --- small shapes consistent with NCHW seg logits ---
    N, C, H, W = 2, 4, 16, 16
    predict = jax.random.normal(k1, (N, C, H, W), dtype=jnp.float32)
    labels = jax.random.randint(k2, (N, H, W), 0, C)
    target = jax.nn.one_hot(labels, C, axis=1, dtype=jnp.float32)   # (N, C, H, W)

    ref = _segloss_2d_ref(predict, target)

    # dense one-hot target path (no wrapper argmax — target streamed into the kernel)
    out = segloss_2d(predict, target)
    jax.block_until_ready(out)
    for got, want in zip(out, ref):
        assert jnp.allclose(got, want, rtol=1e-5, atol=1e-5), (got, want)

    # integer-label fast path (labels-only HBM traffic, int8)
    out_lbl = segloss_2d(predict, labels)
    jax.block_until_ready(out_lbl)
    for got, want in zip(out_lbl, ref):
        assert jnp.allclose(got, want, rtol=1e-5, atol=1e-5), (got, want)

    # bf16 logits path (native bf16 max pass, f32 exp/accumulate)
    out_bf16 = segloss_2d(predict.astype(jnp.bfloat16), target)
    jax.block_until_ready(out_bf16)
    ref_bf16 = _segloss_2d_ref(predict.astype(jnp.bfloat16), target)
    for got, want in zip(out_bf16, ref_bf16):
        assert jnp.allclose(got, want, rtol=1e-3, atol=1e-3), (got, want)

    # --- larger spatial case: exercises big tiles / VMEM-budgeted blocks ---
    N2, C2, H2, W2 = 1, 4, 512, 512
    predict2 = jax.random.normal(k3, (N2, C2, H2, W2), dtype=jnp.float32)
    labels2 = jax.random.randint(k4, (N2, H2, W2), 0, C2)
    target2 = jax.nn.one_hot(labels2, C2, axis=1, dtype=jnp.float32)

    out2 = segloss_2d(predict2, target2)
    jax.block_until_ready(out2)
    ref2 = _segloss_2d_ref(predict2, target2)
    for got, want in zip(out2, ref2):
        assert jnp.allclose(got, want, rtol=3e-4, atol=3e-4), (got, want)

    print("KERNEL_OK")
</pallas_src>

<mosaic_0001>
module attributes {stable_mosaic.version = 11 : i64} {
  func.func @kernel(%arg0: i32, %arg1: i32, %arg2: memref<1x4x2x128xf32, #tpu.memory_space<vmem>>, %arg3: memref<1x4x2x128xf32, #tpu.memory_space<vmem>>, %arg4: memref<1x3x4x128xf32, #tpu.memory_space<vmem>>, %arg5: memref<1x1x128xf32, #tpu.memory_space<vmem>>, %arg6: memref<4x2x128xf32, #tpu.memory_space<vmem>>) attributes {dimension_semantics = [#tpu.dimension_semantics<parallel>, #tpu.dimension_semantics<arbitrary>], iteration_bounds = array<i64: 2, 1>, scalar_prefetch = 0 : i64, scratch_operands = 1 : i64, tpu.core_type = #tpu.core_type<tc>, window_params = [{transform_indices = @transform_0, window_bounds = array<i64: 1, 4, 2, 128>}, {transform_indices = @transform_1, window_bounds = array<i64: 1, 4, 2, 128>}, {transform_indices = @transform_2, window_bounds = array<i64: 1, 3, 4, 128>}, {transform_indices = @transform_3, window_bounds = array<i64: 1, 1, 128>}]} {
    %c0_i32 = arith.constant 0 : i32
    %0 = arith.cmpi eq, %arg1, %c0_i32 : i32
    %1 = arith.extui %0 : i1 to i32
    %c0_i32_0 = arith.constant 0 : i32
    %2 = arith.cmpi ne, %1, %c0_i32_0 : i32
    scf.if %2 {
      %cst_132 = arith.constant 0.000000e+00 : f32
      %146 = vector.broadcast %cst_132 : f32 to vector<1x3x4x128xf32>
      %c0_133 = arith.constant 0 : index
      %c0_134 = arith.constant 0 : index
      %c0_135 = arith.constant 0 : index
      %c0_136 = arith.constant 0 : index
      %147 = vector.load %arg4[%c0_133, %c0_134, %c0_135, %c0_136] : memref<1x3x4x128xf32, #tpu.memory_space<vmem>>, vector<1x3x4x128xf32>
      tpu.vector_store %arg4[%c0_133, %c0_134, %c0_135, %c0_136], %146 {strides = array<i32>} : memref<1x3x4x128xf32, #tpu.memory_space<vmem>>, vector<1x3x4x128xf32>,
      %cst_137 = arith.constant 0.000000e+00 : f32
      %148 = vector.broadcast %cst_137 : f32 to vector<1x1x128xf32>
      %c0_138 = arith.constant 0 : index
      %c0_139 = arith.constant 0 : index
      %c0_140 = arith.constant 0 : index
      %149 = vector.load %arg5[%c0_138, %c0_139, %c0_140] : memref<1x1x128xf32, #tpu.memory_space<vmem>>, vector<1x1x128xf32>
      tpu.vector_store %arg5[%c0_138, %c0_139, %c0_140], %148 {strides = array<i32>} : memref<1x1x128xf32, #tpu.memory_space<vmem>>, vector<1x1x128xf32>,
    } else {
    }
    %c0 = arith.constant 0 : index
    %c0_1 = arith.constant 0 : index
    %c0_2 = arith.constant 0 : index
    %c0_3 = arith.constant 0 : index
    %3 = vector.load %arg2[%c0, %c0_1, %c0_2, %c0_3] : memref<1x4x2x128xf32, #tpu.memory_space<vmem>>, vector<1x1x2x128xf32>
    %4 = vector.shape_cast %3 : vector<1x1x2x128xf32> to vector<2x128xf32>
    %c0_4 = arith.constant 0 : index
    %c0_5 = arith.constant 0 : index
    %c0_6 = arith.constant 0 : index
    %c0_7 = arith.constant 0 : index
    %5 = vector.load %arg3[%c0_4, %c0_5, %c0_6, %c0_7] : memref<1x4x2x128xf32, #tpu.memory_space<vmem>>, vector<1x1x2x128xf32>
    %6 = vector.shape_cast %5 : vector<1x1x2x128xf32> to vector<2x128xf32>
    %c0_8 = arith.constant 0 : index
    %c0_9 = arith.constant 0 : index
    %c0_10 = arith.constant 0 : index
    %c0_11 = arith.constant 0 : index
    %7 = vector.load %arg2[%c0_8, %c0_9, %c0_10, %c0_11] : memref<1x4x2x128xf32, #tpu.memory_space<vmem>>, vector<1x1x2x128xf32>
    %8 = vector.shape_cast %7 : vector<1x1x2x128xf32> to vector<2x128xf32>
    %c0_12 = arith.constant 0 : index
    %c1 = arith.constant 1 : index
    %c0_13 = arith.constant 0 : index
    %c0_14 = arith.constant 0 : index
    %9 = vector.load %arg2[%c0_12, %c1, %c0_13, %c0_14] : memref<1x4x2x128xf32, #tpu.memory_space<vmem>>, vector<1x1x2x128xf32>
    %10 = vector.shape_cast %9 : vector<1x1x2x128xf32> to vector<2x128xf32>
    %c0_15 = arith.constant 0 : index
    %c1_16 = arith.constant 1 : index
    %c0_17 = arith.constant 0 : index
    %c0_18 = arith.constant 0 : index
    %11 = vector.load %arg3[%c0_15, %c1_16, %c0_17, %c0_18] : memref<1x4x2x128xf32, #tpu.memory_space<vmem>>, vector<1x1x2x128xf32>
    %12 = vector.shape_cast %11 : vector<1x1x2x128xf32> to vector<2x128xf32>
    %13 = arith.maximumf %4, %10 : vector<2x128xf32>
    %14 = arith.cmpf ogt, %12, %6 : vector<2x128xf32>
    %15 = arith.select %14, %12, %6 : vector<2x128xi1>, vector<2x128xf32>
    %16 = arith.select %14, %10, %8 : vector<2x128xi1>, vector<2x128xf32>
    %c0_19 = arith.constant 0 : index
    %c2 = arith.constant 2 : index
    %c0_20 = arith.constant 0 : index
    %c0_21 = arith.constant 0 : index
    %17 = vector.load %arg2[%c0_19, %c2, %c0_20, %c0_21] : memref<1x4x2x128xf32, #tpu.memory_space<vmem>>, vector<1x1x2x128xf32>
    %18 = vector.shape_cast %17 : vector<1x1x2x128xf32> to vector<2x128xf32>
    %c0_22 = arith.constant 0 : index
    %c2_23 = arith.constant 2 : index
    %c0_24 = arith.constant 0 : index
    %c0_25 = arith.constant 0 : index
    %19 = vector.load %arg3[%c0_22, %c2_23, %c0_24, %c0_25] : memref<1x4x2x128xf32, #tpu.memory_space<vmem>>, vector<1x1x2x128xf32>
    %20 = vector.shape_cast %19 : vector<1x1x2x128xf32> to vector<2x128xf32>
    %21 = arith.maximumf %13, %18 : vector<2x128xf32>
    %22 = arith.cmpf ogt, %20, %15 : vector<2x128xf32>
    %23 = arith.select %22, %20, %15 : vector<2x128xi1>, vector<2x128xf32>
    %24 = arith.select %22, %18, %16 : vector<2x128xi1>, vector<2x128xf32>
    %c0_26 = arith.constant 0 : index
    %c3 = arith.constant 3 : index
    %c0_27 = arith.constant 0 : index
    %c0_28 = arith.constant 0 : index
    %25 = vector.load %arg2[%c0_26, %c3, %c0_27, %c0_28] : memref<1x4x2x128xf32, #tpu.memory_space<vmem>>, vector<1x1x2x128xf32>
    %26 = vector.shape_cast %25 : vector<1x1x2x128xf32> to vector<2x128xf32>
    %c0_29 = arith.constant 0 : index
    %c3_30 = arith.constant 3 : index
    %c0_31 = arith.constant 0 : index
    %c0_32 = arith.constant 0 : index
    %27 = vector.load %arg3[%c0_29, %c3_30, %c0_31, %c0_32] : memref<1x4x2x128xf32, #tpu.memory_space<vmem>>, vector<1x1x2x128xf32>
    %28 = vector.shape_cast %27 : vector<1x1x2x128xf32> to vector<2x128xf32>
    %29 = arith.maximumf %21, %26 : vector<2x128xf32>
    %30 = arith.cmpf ogt, %28, %23 : vector<2x128xf32>
    %31 = arith.select %30, %26, %24 : vector<2x128xi1>, vector<2x128xf32>
    %cst = arith.constant 0.000000e+00 : f32
    %32 = vector.broadcast %cst : f32 to vector<2x128xf32>
    %c0_33 = arith.constant 0 : index
    %c0_34 = arith.constant 0 : index
    %c0_35 = arith.constant 0 : index
    %c0_36 = arith.constant 0 : index
    %33 = vector.load %arg2[%c0_33, %c0_34, %c0_35, %c0_36] : memref<1x4x2x128xf32, #tpu.memory_space<vmem>>, vector<1x1x2x128xf32>
    %34 = vector.shape_cast %33 : vector<1x1x2x128xf32> to vector<2x128xf32>
    %35 = arith.subf %34, %29 : vector<2x128xf32>
    %36 = math.exp %35 : vector<2x128xf32>
    %c0_37 = arith.constant 0 : index
    %c0_38 = arith.constant 0 : index
    %c0_39 = arith.constant 0 : index
    %37 = vector.load %arg6[%c0_37, %c0_38, %c0_39] : memref<4x2x128xf32, #tpu.memory_space<vmem>>, vector<1x2x128xf32>
    %38 = vector.shape_cast %37 : vector<1x2x128xf32> to vector<2x128xf32>
    %39 = vector.shape_cast %36 : vector<2x128xf32> to vector<1x2x128xf32>
    tpu.vector_store %arg6[%c0_37, %c0_38, %c0_39], %39 {strides = array<i32>} : memref<4x2x128xf32, #tpu.memory_space<vmem>>, vector<1x2x128xf32>,
    %40 = arith.addf %32, %36 : vector<2x128xf32>
    %c0_40 = arith.constant 0 : index
    %c0_41 = arith.constant 0 : index
    %c0_42 = arith.constant 0 : index
    %c0_43 = arith.constant 0 : index
    %41 = vector.load %arg3[%c0_40, %c0_41, %c0_42, %c0_43] : memref<1x4x2x128xf32, #tpu.memory_space<vmem>>, vector<1x1x2x128xf32>
    %42 = vector.shape_cast %41 : vector<1x1x2x128xf32> to vector<2x128xf32>
    %cst_44 = arith.constant dense<0.000000e+00> : vector<128xf32>
    %43 = vector.multi_reduction <add>, %42, %cst_44 [0] : vector<2x128xf32> to vector<128xf32>
    %44 = vector.shape_cast %43 : vector<128xf32> to vector<1x128xf32>
    %c0_45 = arith.constant 0 : index
    %c1_46 = arith.constant 1 : index
    %c0_47 = arith.constant 0 : index
    %c0_48 = arith.constant 0 : index
    %45 = vector.load %arg2[%c0_45, %c1_46, %c0_47, %c0_48] : memref<1x4x2x128xf32, #tpu.memory_space<vmem>>, vector<1x1x2x128xf32>
    %46 = vector.shape_cast %45 : vector<1x1x2x128xf32> to vector<2x128xf32>
    %47 = arith.subf %46, %29 : vector<2x128xf32>
    %48 = math.exp %47 : vector<2x128xf32>
    %c1_49 = arith.constant 1 : index
    %c0_50 = arith.constant 0 : index
    %c0_51 = arith.constant 0 : index
    %49 = vector.load %arg6[%c1_49, %c0_50, %c0_51] : memref<4x2x128xf32, #tpu.memory_space<vmem>>, vector<1x2x128xf32>
    %50 = vector.shape_cast %49 : vector<1x2x128xf32> to vector<2x128xf32>
    %51 = vector.shape_cast %48 : vector<2x128xf32> to vector<1x2x128xf32>
    tpu.vector_store %arg6[%c1_49, %c0_50, %c0_51], %51 {strides = array<i32>} : memref<4x2x128xf32, #tpu.memory_space<vmem>>, vector<1x2x128xf32>,
    %52 = arith.addf %40, %48 : vector<2x128xf32>
    %c0_52 = arith.constant 0 : index
    %c1_53 = arith.constant 1 : index
    %c0_54 = arith.constant 0 : index
    %c0_55 = arith.constant 0 : index
    %53 = vector.load %arg3[%c0_52, %c1_53, %c0_54, %c0_55] : memref<1x4x2x128xf32, #tpu.memory_space<vmem>>, vector<1x1x2x128xf32>
    %54 = vector.shape_cast %53 : vector<1x1x2x128xf32> to vector<2x128xf32>
    %cst_56 = arith.constant dense<0.000000e+00> : vector<128xf32>
    %55 = vector.multi_reduction <add>, %54, %cst_56 [0] : vector<2x128xf32> to vector<128xf32>
    %56 = vector.shape_cast %55 : vector<128xf32> to vector<1x128xf32>
    %c0_57 = arith.constant 0 : index
    %c2_58 = arith.constant 2 : index
    %c0_59 = arith.constant 0 : index
    %c0_60 = arith.constant 0 : index
    %57 = vector.load %arg2[%c0_57, %c2_58, %c0_59, %c0_60] : memref<1x4x2x128xf32, #tpu.memory_space<vmem>>, vector<1x1x2x128xf32>
    %58 = vector.shape_cast %57 : vector<1x1x2x128xf32> to vector<2x128xf32>
    %59 = arith.subf %58, %29 : vector<2x128xf32>
    %60 = math.exp %59 : vector<2x128xf32>
    %c2_61 = arith.constant 2 : index
    %c0_62 = arith.constant 0 : index
    %c0_63 = arith.constant 0 : index
    %61 = vector.load %arg6[%c2_61, %c0_62, %c0_63] : memref<4x2x128xf32, #tpu.memory_space<vmem>>, vector<1x2x128xf32>
    %62 = vector.shape_cast %61 : vector<1x2x128xf32> to vector<2x128xf32>
    %63 = vector.shape_cast %60 : vector<2x128xf32> to vector<1x2x128xf32>
    tpu.vector_store %arg6[%c2_61, %c0_62, %c0_63], %63 {strides = array<i32>} : memref<4x2x128xf32, #tpu.memory_space<vmem>>, vector<1x2x128xf32>,
    %64 = arith.addf %52, %60 : vector<2x128xf32>
    %c0_64 = arith.constant 0 : index
    %c2_65 = arith.constant 2 : index
    %c0_66 = arith.constant 0 : index
    %c0_67 = arith.constant 0 : index
    %65 = vector.load %arg3[%c0_64, %c2_65, %c0_66, %c0_67] : memref<1x4x2x128xf32, #tpu.memory_space<vmem>>, vector<1x1x2x128xf32>
    %66 = vector.shape_cast %65 : vector<1x1x2x128xf32> to vector<2x128xf32>
    %cst_68 = arith.constant dense<0.000000e+00> : vector<128xf32>
    %67 = vector.multi_reduction <add>, %66, %cst_68 [0] : vector<2x128xf32> to vector<128xf32>
    %68 = vector.shape_cast %67 : vector<128xf32> to vector<1x128xf32>
    %c0_69 = arith.constant 0 : index
    %c3_70 = arith.constant 3 : index
    %c0_71 = arith.constant 0 : index
    %c0_72 = arith.constant 0 : index
    %69 = vector.load %arg2[%c0_69, %c3_70, %c0_71, %c0_72] : memref<1x4x2x128xf32, #tpu.memory_space<vmem>>, vector<1x1x2x128xf32>
    %70 = vector.shape_cast %69 : vector<1x1x2x128xf32> to vector<2x128xf32>
    %71 = arith.subf %70, %29 : vector<2x128xf32>
    %72 = math.exp %71 : vector<2x128xf32>
    %c3_73 = arith.constant 3 : index
    %c0_74 = arith.constant 0 : index
    %c0_75 = arith.constant 0 : index
    %73 = vector.load %arg6[%c3_73, %c0_74, %c0_75] : memref<4x2x128xf32, #tpu.memory_space<vmem>>, vector<1x2x128xf32>
    %74 = vector.shape_cast %73 : vector<1x2x128xf32> to vector<2x128xf32>
    %75 = vector.shape_cast %72 : vector<2x128xf32> to vector<1x2x128xf32>
    tpu.vector_store %arg6[%c3_73, %c0_74, %c0_75], %75 {strides = array<i32>} : memref<4x2x128xf32, #tpu.memory_space<vmem>>, vector<1x2x128xf32>,
    %76 = arith.addf %64, %72 : vector<2x128xf32>
    %c0_76 = arith.constant 0 : index
    %c3_77 = arith.constant 3 : index
    %c0_78 = arith.constant 0 : index
    %c0_79 = arith.constant 0 : index
    %77 = vector.load %arg3[%c0_76, %c3_77, %c0_78, %c0_79] : memref<1x4x2x128xf32, #tpu.memory_space<vmem>>, vector<1x1x2x128xf32>
    %78 = vector.shape_cast %77 : vector<1x1x2x128xf32> to vector<2x128xf32>
    %cst_80 = arith.constant dense<0.000000e+00> : vector<128xf32>
    %79 = vector.multi_reduction <add>, %78, %cst_80 [0] : vector<2x128xf32> to vector<128xf32>
    %80 = vector.shape_cast %79 : vector<128xf32> to vector<1x128xf32>
    %81 = math.log %76 : vector<2x128xf32>
    %82 = arith.addf %29, %81 : vector<2x128xf32>
    %83 = tpu.reciprocal %76 : vector<2x128xf32> -> vector<2x128xf32>
    %84 = arith.subf %82, %31 : vector<2x128xf32>
    %cst_81 = arith.constant dense<0.000000e+00> : vector<128xf32>
    %85 = vector.multi_reduction <add>, %84, %cst_81 [0] : vector<2x128xf32> to vector<128xf32>
    %86 = vector.shape_cast %85 : vector<128xf32> to vector<1x128xf32>
    %c0_82 = arith.constant 0 : index
    %c0_83 = arith.constant 0 : index
    %c0_84 = arith.constant 0 : index
    %87 = vector.load %arg6[%c0_82, %c0_83, %c0_84] : memref<4x2x128xf32, #tpu.memory_space<vmem>>, vector<1x2x128xf32>
    %88 = vector.shape_cast %87 : vector<1x2x128xf32> to vector<2x128xf32>
    %89 = arith.mulf %88, %83 : vector<2x128xf32>
    %c0_85 = arith.constant 0 : index
    %c0_86 = arith.constant 0 : index
    %c0_87 = arith.constant 0 : index
    %c0_88 = arith.constant 0 : index
    %90 = vector.load %arg3[%c0_85, %c0_86, %c0_87, %c0_88] : memref<1x4x2x128xf32, #tpu.memory_space<vmem>>, vector<1x1x2x128xf32>
    %91 = vector.shape_cast %90 : vector<1x1x2x128xf32> to vector<2x128xf32>
    %92 = arith.mulf %89, %91 : vector<2x128xf32>
    %cst_89 = arith.constant dense<0.000000e+00> : vector<128xf32>
    %93 = vector.multi_reduction <add>, %92, %cst_89 [0] : vector<2x128xf32> to vector<128xf32>
    %94 = vector.shape_cast %93 : vector<128xf32> to vector<1x128xf32>
    %cst_90 = arith.constant dense<0.000000e+00> : vector<128xf32>
    %95 = vector.multi_reduction <add>, %89, %cst_90 [0] : vector<2x128xf32> to vector<128xf32>
    %96 = vector.shape_cast %95 : vector<128xf32> to vector<1x128xf32>
    %c1_91 = arith.constant 1 : index
    %c0_92 = arith.constant 0 : index
    %c0_93 = arith.constant 0 : index
    %97 = vector.load %arg6[%c1_91, %c0_92, %c0_93] : memref<4x2x128xf32, #tpu.memory_space<vmem>>, vector<1x2x128xf32>
    %98 = vector.shape_cast %97 : vector<1x2x128xf32> to vector<2x128xf32>
    %99 = arith.mulf %98, %83 : vector<2x128xf32>
    %c0_94 = arith.constant 0 : index
    %c1_95 = arith.constant 1 : index
    %c0_96 = arith.constant 0 : index
    %c0_97 = arith.constant 0 : index
    %100 = vector.load %arg3[%c0_94, %c1_95, %c0_96, %c0_97] : memref<1x4x2x128xf32, #tpu.memory_space<vmem>>, vector<1x1x2x128xf32>
    %101 = vector.shape_cast %100 : vector<1x1x2x128xf32> to vector<2x128xf32>
    %102 = arith.mulf %99, %101 : vector<2x128xf32>
    %cst_98 = arith.constant dense<0.000000e+00> : vector<128xf32>
    %103 = vector.multi_reduction <add>, %102, %cst_98 [0] : vector<2x128xf32> to vector<128xf32>
    %104 = vector.shape_cast %103 : vector<128xf32> to vector<1x128xf32>
    %cst_99 = arith.constant dense<0.000000e+00> : vector<128xf32>
    %105 = vector.multi_reduction <add>, %99, %cst_99 [0] : vector<2x128xf32> to vector<128xf32>
    %106 = vector.shape_cast %105 : vector<128xf32> to vector<1x128xf32>
    %c2_100 = arith.constant 2 : index
    %c0_101 = arith.constant 0 : index
    %c0_102 = arith.constant 0 : index
    %107 = vector.load %arg6[%c2_100, %c0_101, %c0_102] : memref<4x2x128xf32, #tpu.memory_space<vmem>>, vector<1x2x128xf32>
    %108 = vector.shape_cast %107 : vector<1x2x128xf32> to vector<2x128xf32>
    %109 = arith.mulf %108, %83 : vector<2x128xf32>
    %c0_103 = arith.constant 0 : index
    %c2_104 = arith.constant 2 : index
    %c0_105 = arith.constant 0 : index
    %c0_106 = arith.constant 0 : index
    %110 = vector.load %arg3[%c0_103, %c2_104, %c0_105, %c0_106] : memref<1x4x2x128xf32, #tpu.memory_space<vmem>>, vector<1x1x2x128xf32>
    %111 = vector.shape_cast %110 : vector<1x1x2x128xf32> to vector<2x128xf32>
    %112 = arith.mulf %109, %111 : vector<2x128xf32>
    %cst_107 = arith.constant dense<0.000000e+00> : vector<128xf32>
    %113 = vector.multi_reduction <add>, %112, %cst_107 [0] : vector<2x128xf32> to vector<128xf32>
    %114 = vector.shape_cast %113 : vector<128xf32> to vector<1x128xf32>
    %cst_108 = arith.constant dense<0.000000e+00> : vector<128xf32>
    %115 = vector.multi_reduction <add>, %109, %cst_108 [0] : vector<2x128xf32> to vector<128xf32>
    %116 = vector.shape_cast %115 : vector<128xf32> to vector<1x128xf32>
    %c3_109 = arith.constant 3 : index
    %c0_110 = arith.constant 0 : index
    %c0_111 = arith.constant 0 : index
    %117 = vector.load %arg6[%c3_109, %c0_110, %c0_111] : memref<4x2x128xf32, #tpu.memory_space<vmem>>, vector<1x2x128xf32>
    %118 = vector.shape_cast %117 : vector<1x2x128xf32> to vector<2x128xf32>
    %119 = arith.mulf %118, %83 : vector<2x128xf32>
    %c0_112 = arith.constant 0 : index
    %c3_113 = arith.constant 3 : index
    %c0_114 = arith.constant 0 : index
    %c0_115 = arith.constant 0 : index
    %120 = vector.load %arg3[%c0_112, %c3_113, %c0_114, %c0_115] : memref<1x4x2x128xf32, #tpu.memory_space<vmem>>, vector<1x1x2x128xf32>
    %121 = vector.shape_cast %120 : vector<1x1x2x128xf32> to vector<2x128xf32>
    %122 = arith.mulf %119, %121 : vector<2x128xf32>
    %cst_116 = arith.constant dense<0.000000e+00> : vector<128xf32>
    %123 = vector.multi_reduction <add>, %122, %cst_116 [0] : vector<2x128xf32> to vector<128xf32>
    %124 = vector.shape_cast %123 : vector<128xf32> to vector<1x128xf32>
    %cst_117 = arith.constant dense<0.000000e+00> : vector<128xf32>
    %125 = vector.multi_reduction <add>, %119, %cst_117 [0] : vector<2x128xf32> to vector<128xf32>
    %126 = vector.shape_cast %125 : vector<128xf32> to vector<1x128xf32>
    %127 = tpu.concatenate %94, %104, %114, %124 in 0 : vector<1x128xf32>, vector<1x128xf32>, vector<1x128xf32>, vector<1x128xf32> -> vector<4x128xf32>
    %128 = tpu.concatenate %96, %106, %116, %126 in 0 : vector<1x128xf32>, vector<1x128xf32>, vector<1x128xf32>, vector<1x128xf32> -> vector<4x128xf32>
    %129 = tpu.concatenate %44, %56, %68, %80 in 0 : vector<1x128xf32>, vector<1x128xf32>, vector<1x128xf32>, vector<1x128xf32> -> vector<4x128xf32>
    %c0_118 = arith.constant 0 : index
    %c0_119 = arith.constant 0 : index
    %c0_120 = arith.constant 0 : index
    %c0_121 = arith.constant 0 : index
    %130 = vector.load %arg4[%c0_118, %c0_119, %c0_120, %c0_121] : memref<1x3x4x128xf32, #tpu.memory_space<vmem>>, vector<1x3x4x128xf32>
    %131 = vector.shape_cast %130 : vector<1x3x4x128xf32> to vector<3x4x128xf32>
    %132 = vector.shape_cast %127 : vector<4x128xf32> to vector<1x4x128xf32>
    %133 = vector.shape_cast %128 : vector<4x128xf32> to vector<1x4x128xf32>
    %134 = vector.shape_cast %129 : vector<4x128xf32> to vector<1x4x128xf32>
    %135 = tpu.concatenate %132, %133, %134 in 0 : vector<1x4x128xf32>, vector<1x4x128xf32>, vector<1x4x128xf32> -> vector<3x4x128xf32>
    %136 = arith.addf %131, %135 : vector<3x4x128xf32>
    %c0_122 = arith.constant 0 : index
    %c0_123 = arith.constant 0 : index
    %c0_124 = arith.constant 0 : index
    %c0_125 = arith.constant 0 : index
    %137 = vector.load %arg4[%c0_122, %c0_123, %c0_124, %c0_125] : memref<1x3x4x128xf32, #tpu.memory_space<vmem>>, vector<1x3x4x128xf32>
    %138 = vector.shape_cast %137 : vector<1x3x4x128xf32> to vector<3x4x128xf32>
    %139 = vector.shape_cast %136 : vector<3x4x128xf32> to vector<1x3x4x128xf32>
    tpu.vector_store %arg4[%c0_122, %c0_123, %c0_124, %c0_125], %139 {strides = array<i32>} : memref<1x3x4x128xf32, #tpu.memory_space<vmem>>, vector<1x3x4x128xf32>,
    %c0_126 = arith.constant 0 : index
    %c0_127 = arith.constant 0 : index
    %c0_128 = arith.constant 0 : index
    %140 = vector.load %arg5[%c0_126, %c0_127, %c0_128] : memref<1x1x128xf32, #tpu.memory_space<vmem>>, vector<1x1x128xf32>
    %141 = vector.shape_cast %140 : vector<1x1x128xf32> to vector<1x128xf32>
    %142 = arith.addf %141, %86 : vector<1x128xf32>
    %c0_129 = arith.constant 0 : index
    %c0_130 = arith.constant 0 : index
    %c0_131 = arith.constant 0 : index
    %143 = vector.load %arg5[%c0_129, %c0_130, %c0_131] : memref<1x1x128xf32, #tpu.memory_space<vmem>>, vector<1x1x128xf32>
    %144 = vector.shape_cast %143 : vector<1x1x128xf32> to vector<1x128xf32>
    %145 = vector.shape_cast %142 : vector<1x128xf32> to vector<1x1x128xf32>
    tpu.vector_store %arg5[%c0_129, %c0_130, %c0_131], %145 {strides = array<i32>} : memref<1x1x128xf32, #tpu.memory_space<vmem>>, vector<1x1x128xf32>,
    return
  }
  func.func @transform_0(%arg0: i32, %arg1: i32) -> (i32, i32, i32, i32) {
    %c0_i32 = arith.constant 0 : i32
    %c0_i32_0 = arith.constant 0 : i32
    %c0_i32_1 = arith.constant 0 : i32
    return %arg0, %c0_i32, %arg1, %c0_i32_0 : i32, i32, i32, i32
  }
  func.func @transform_1(%arg0: i32, %arg1: i32) -> (i32, i32, i32, i32) {
    %c0_i32 = arith.constant 0 : i32
    %c0_i32_0 = arith.constant 0 : i32
    %c0_i32_1 = arith.constant 0 : i32
    return %arg0, %c0_i32, %arg1, %c0_i32_0 : i32, i32, i32, i32
  }
  func.func @transform_2(%arg0: i32, %arg1: i32) -> (i32, i32, i32, i32) {
    %c0_i32 = arith.constant 0 : i32
    %c0_i32_0 = arith.constant 0 : i32
    %c0_i32_1 = arith.constant 0 : i32
    %c0_i32_2 = arith.constant 0 : i32
    return %arg0, %c0_i32, %c0_i32_0, %c0_i32_1 : i32, i32, i32, i32
  }
  func.func @transform_3(%arg0: i32, %arg1: i32) -> (i32, i32, i32) {
    %c0_i32 = arith.constant 0 : i32
    %c0_i32_0 = arith.constant 0 : i32
    %c0_i32_1 = arith.constant 0 : i32
    return %arg0, %c0_i32, %c0_i32_0 : i32, i32, i32
  }
}

</mosaic_0001>

<llo_original>
// kernel: segloss_2d.1
$region0: #{segloss_2d.1}
  #allocation0 [shape = 'u32[]', space=smem, size = 0x4, offset = 0x4, fixed_abs, tag = 'smem constant byte address 0x4 - core index']
  #allocation1 [shape = 'u32[144,128]{1,0:T(1,128)}', space=vmem, size = 0x12000, scoped, tag = 'internal scratch']
  #allocation2 [shape = 'f32[4,2,128]{2,1,0:T(2,128)}', space=vmem, size = 0x1000, scoped, tag = 'scratch operand']
  %s0 = inlined_call_operand.vmem [shape: f32[2,4,2,128], index: 0, kind: input, shape index: {}]
  %s1 = inlined_call_operand.vmem [shape: f32[2,4,2,128], index: 1, kind: input, shape index: {}]
  %s2 = inlined_call_operand.vmem [shape: f32[2,3,4,128], index: 2, kind: output, shape index: {0}]
  %s3 = inlined_call_operand.vmem [shape: f32[2,1,128], index: 3, kind: output, shape index: {1}]
  %4 = xla_tuple %s2, %s3
  %s5 = sld [smem:[#allocation0]]
  $region53: #{segloss_2d.1} parent=0
    _
  %s7 = ssub.s32 1, %s5
  %s8 = scalar_select 0, %s7, %s5
  loop: start=0, step=1, limit=4
  $region2: #{segloss_2d.1} parent=0 // loop_pre_header
    _
  $region3: #{segloss_2d.1} parent=0 // loop_header
    %s10 = sphi 0, %s14
    %p11 = scmp.ge.s32.totalorder %s10, 4
    %s17 = sphi 0, %s29
    %s18 = sphi 0, %s25
    %s19 = sphi 0, %s17
    %s20 = sphi 0, %s18
    %s21 = sphi 0, %s19
    %s22 = sphi 0, %s20
    %s34 = sphi 0, %s36
    %s37 = sphi 0, %s34
    %s38 = sphi 0, %s37
    %s54 = sphi 0, %s38
    %s62 = sphi 0, %s64
    %s65 = sphi 0, %s62
    %s66 = sphi 0, %s65
    %s82 = sphi 0, %s66
    %s88 = sphi 0, %s90
    %s91 = sphi 0, %s88
    %s92 = sphi 0, %s91
    %s108 = sphi 0, %s92
    %s114 = sphi 0, %s116
    %s117 = sphi 0, %s114
    %s118 = sphi 0, %s117
    %s134 = sphi 0, %s118
  $region4: #{segloss_2d.1} parent=0 // loop_header_branch
    %13 = sbr.rel (%p11) target = $region8
  $region5: #{segloss_2d.1} parent=0 // loop_body
    %s15 = ssub.s32 %s10, 1
    %s16 = ssub.s32 %s10, 2
    %s23 = sadd.s32 1, %s18
    %p24 = scmp.ge.s32.totalorder %s23, 1
    %s25 = scalar_select %p24, 0, %s23
    %s26 = sadd.s32 1, %s17
    %s27 = scalar_select %p24, %s26, %s17
    %p28 = scmp.ge.s32.totalorder %s27, 2
    %s29 = scalar_select %p28, 0, %s27
    %s30 = ssub.s32 %s17, %s29
    %s31 = ssub.s32 %s18, %s25
    %s32 = sor.u32 %s30, %s31
    %p33 = scmp.eq.s32.totalorder %s32, 0
    %s35 = sadd.s32 %s34, 1
    %s36 = scalar_select %p33, %s34, %s35
    %p39 = pneg %p33
    %p40 = scmp.eq.s32.totalorder %s10, 1
    %p41 = por %p39, %p40
    %p42 = scmp.ne.s32.totalorder %s34, %s37
    %p43 = scmp.eq.s32.totalorder %s10, 0
    %p44 = por %p42, %p43
    %p45 = scmp.ne.s32.totalorder %s34, %s37
    %p46 = scmp.eq.s32.totalorder %s15, 1
    %p47 = por %p45, %p46
    %p48 = scmp.ne.s32.totalorder %s37, %s38
    %p49 = scmp.eq.s32.totalorder %s15, 0
    %p50 = por %p48, %p49
    %p51 = scmp.ne.s32.totalorder %s37, %s38
    %p52 = scmp.eq.s32.totalorder %s16, 1
    %p53 = por %p51, %p52
    %p55 = scmp.ne.s32.totalorder %s38, %s54
    %p56 = scmp.eq.s32.totalorder %s16, 0
    %p57 = por %p55, %p56
    %s58 = ssub.s32 %s17, %s29
    %s59 = ssub.s32 %s18, %s25
    %s60 = sor.u32 %s58, %s59
    %p61 = scmp.eq.s32.totalorder %s60, 0
    %s63 = sadd.s32 %s62, 1
    %s64 = scalar_select %p61, %s62, %s63
    %p67 = pneg %p61
    %p68 = scmp.eq.s32.totalorder %s10, 1
    %p69 = por %p67, %p68
    %p70 = scmp.ne.s32.totalorder %s62, %s65
    %p71 = scmp.eq.s32.totalorder %s10, 0
    %p72 = por %p70, %p71
    %p73 = scmp.ne.s32.totalorder %s62, %s65
    %p74 = scmp.eq.s32.totalorder %s15, 1
    %p75 = por %p73, %p74
    %p76 = scmp.ne.s32.totalorder %s65, %s66
    %p77 = scmp.eq.s32.totalorder %s15, 0
    %p78 = por %p76, %p77
    %p79 = scmp.ne.s32.totalorder %s65, %s66
    %p80 = scmp.eq.s32.totalorder %s16, 1
    %p81 = por %p79, %p80
    %p83 = scmp.ne.s32.totalorder %s66, %s82
    %p84 = scmp.eq.s32.totalorder %s16, 0
    %p85 = por %p83, %p84
    %s86 = ssub.s32 %s17, %s29
    %p87 = scmp.eq.s32.totalorder %s86, 0
    %s89 = sadd.s32 %s88, 1
    %s90 = scalar_select %p87, %s88, %s89
    %p93 = pneg %p87
    %p94 = scmp.eq.s32.totalorder %s10, 1
    %p95 = por %p93, %p94
    %p96 = scmp.ne.s32.totalorder %s88, %s91
    %p97 = scmp.eq.s32.totalorder %s10, 0
    %p98 = por %p96, %p97
    %p99 = scmp.ne.s32.totalorder %s88, %s91
    %p100 = scmp.eq.s32.totalorder %s15, 1
    %p101 = por %p99, %p100
    %p102 = scmp.ne.s32.totalorder %s91, %s92
    %p103 = scmp.eq.s32.totalorder %s15, 0
    %p104 = por %p102, %p103
    %p105 = scmp.ne.s32.totalorder %s91, %s92
    %p106 = scmp.eq.s32.totalorder %s16, 1
    %p107 = por %p105, %p106
    %p109 = scmp.ne.s32.totalorder %s92, %s108
    %p110 = scmp.eq.s32.totalorder %s16, 0
    %p111 = por %p109, %p110
    %s112 = ssub.s32 %s17, %s29
    %p113 = scmp.eq.s32.totalorder %s112, 0
    %s115 = sadd.s32 %s114, 1
    %s116 = scalar_select %p113, %s114, %s115
    %p119 = pneg %p113
    %p120 = scmp.eq.s32.totalorder %s10, 1
    %p121 = por %p119, %p120
    %p122 = scmp.ne.s32.totalorder %s114, %s117
    %p123 = scmp.eq.s32.totalorder %s10, 0
    %p124 = por %p122, %p123
    %p125 = scmp.ne.s32.totalorder %s114, %s117
    %p126 = scmp.eq.s32.totalorder %s15, 1
    %p127 = por %p125, %p126
    %p128 = scmp.ne.s32.totalorder %s117, %s118
    %p129 = scmp.eq.s32.totalorder %s15, 0
    %p130 = por %p128, %p129
    %p131 = scmp.ne.s32.totalorder %s117, %s118
    %p132 = scmp.eq.s32.totalorder %s16, 1
    %p133 = por %p131, %p132
    %p135 = scmp.ne.s32.totalorder %s118, %s134
    %p136 = scmp.eq.s32.totalorder %s16, 0
    %p137 = por %p135, %p136
    %p138 = scmp.le.s32.totalorder 1, %s10
    %p139 = scmp.lt.s32.totalorder %s10, 3
    %p140 = pnand %p138, %p139
    %p141 = pneg %p140
    // Predicated region
    $region9: #{segloss_2d.1} parent=5 // pred_check
      _
    $region10: #{segloss_2d.1} parent=5 // pred_check_branch
      %143 = sbr.rel (%p140) target = $region12
    $region11: #{segloss_2d.1} parent=5 // pred_region
      %s144 = ssub.s32 %s10, 1
    $region12: #{segloss_2d.1} parent=5 // pred_fallthru
      _
    %p145 = scmp.lt.s32.totalorder %s10, 2
    // Predicated region
    $region13: #{segloss_2d.1} parent=5 // pred_check
      %p146 = pneg %p145
    $region14: #{segloss_2d.1} parent=5 // pred_check_branch
      %148 = sbr.rel (%p146) target = $region16
    $region15: #{segloss_2d.1} parent=5 // pred_region
      // Predicated region
      $region17: #{segloss_2d.1} parent=15 // pred_check
        %p149 = pneg %p44
      $region18: #{segloss_2d.1} parent=15 // pred_check_branch
        %151 = sbr.rel (%p149) target = $region20
      $region19: #{segloss_2d.1} parent=15 // pred_region
        %p152 = scmp.lt.s32.totalorder %s17, 1
        %s153 = scalar_select %p152, %s17, 1
        %p154 = scmp.lt.s32.totalorder %s18, 0
        %s155 = scalar_select %p154, %s18, 0
        %s156 = smul.addr %s153, 4
        %s157 = sadd.s32 %s155, %s156
        %s158 = smul.addr %s157, 2
        %s159 = scalar_lea.vmem %s0, %s158
      $region20: #{segloss_2d.1} parent=15 // pred_fallthru
        _
      // Predicated region
      $region21: #{segloss_2d.1} parent=15 // pred_check
        %p160 = pneg %p72
      $region22: #{segloss_2d.1} parent=15 // pred_check_branch
        %162 = sbr.rel (%p160) target = $region24
      $region23: #{segloss_2d.1} parent=15 // pred_region
        %p163 = scmp.lt.s32.totalorder %s17, 1
        %s164 = scalar_select %p163, %s17, 1
        %p165 = scmp.lt.s32.totalorder %s18, 0
        %s166 = scalar_select %p165, %s18, 0
        %s167 = smul.addr %s164, 4
        %s168 = sadd.s32 %s166, %s167
        %s169 = smul.addr %s168, 2
        %s170 = scalar_lea.vmem %s1, %s169
      $region24: #{segloss_2d.1} parent=15 // pred_fallthru
        _
    $region16: #{segloss_2d.1} parent=5 // pred_fallthru
      _
    %p171 = scmp.le.s32.totalorder 1, %s10
    %p172 = scmp.lt.s32.totalorder %s10, 3
    %p173 = pnand %p171, %p172
    %p174 = pneg %p173
    // Predicated region
    $region25: #{segloss_2d.1} parent=5 // pred_check
      _
    $region26: #{segloss_2d.1} parent=5 // pred_check_branch
      %176 = sbr.rel (%p173) target = $region28
    $region27: #{segloss_2d.1} parent=5 // pred_region
      %s177 = ssub.s32 %s10, 1
      %p178 = scmp.lt.s32.totalorder %s19, 1
      %s179 = scalar_select %p178, %s19, 1
      %p180 = scmp.lt.s32.totalorder %s20, 0
      %s181 = scalar_select %p180, %s20, 0
      %s182 = smul.addr %s179, 4
      %s183 = sadd.s32 %s181, %s182
      %s184 = smul.addr %s183, 2
      %s185 = scalar_lea.vmem %s0, %s184
      %p186 = pneg %p50
      %p187 = pneg %p47
      %p188 = scmp.lt.s32.totalorder %s19, 1
      %s189 = scalar_select %p188, %s19, 1
      %p190 = scmp.lt.s32.totalorder %s20, 0
      %s191 = scalar_select %p190, %s20, 0
      %s192 = smul.addr %s189, 4
      %s193 = sadd.s32 %s191, %s192
      %s194 = smul.addr %s193, 2
      %s195 = scalar_lea.vmem %s1, %s194
      %p196 = pneg %p78
      %p197 = pneg %p75
      %p198 = pneg %p104
      %p199 = pneg %p101
      %p200 = scmp.lt.s32.totalorder %s19, 1
      %s201 = scalar_select %p200, %s19, 1
      %s202 = smul.addr %s201, 3
      %s203 = smul.addr %s202, 4
      %s204 = scalar_lea.vmem %s2, %s203
      %p205 = pneg %p130
      %p206 = pneg %p127
      %p207 = scmp.lt.s32.totalorder %s19, 1
      %s208 = scalar_select %p207, %s19, 1
      %s209 = scalar_lea.vmem %s3, %s208
      %p210 = scmp.lt.s32.totalorder %s19, 1
      %s211 = scalar_select %p210, %s19, 1
      %p212 = scmp.lt.s32.totalorder %s20, 0
      %s213 = scalar_select %p212, %s20, 0
      %s214 = smul.addr %s211, 4
      %s215 = sadd.s32 %s213, %s214
      %s216 = smul.addr %s215, 2
      %s217 = scalar_lea.vmem %s0, %s216
      %p218 = scmp.lt.s32.totalorder %s19, 1
      %s219 = scalar_select %p218, %s19, 1
      %p220 = scmp.lt.s32.totalorder %s20, 0
      %s221 = scalar_select %p220, %s20, 0
      %s222 = smul.addr %s219, 4
      %s223 = sadd.s32 %s221, %s222
      %s224 = smul.addr %s223, 2
      %s225 = scalar_lea.vmem %s1, %s224
      %p226 = scmp.lt.s32.totalorder %s19, 1
      %s227 = scalar_select %p226, %s19, 1
      %s228 = smul.addr %s227, 3
      %s229 = smul.addr %s228, 4
      %s230 = scalar_lea.vmem %s2, %s229
      %p231 = scmp.lt.s32.totalorder %s19, 1
      %s232 = scalar_select %p231, %s19, 1
      %s233 = scalar_lea.vmem %s3, %s232
      %p234 = scmp.eq.s32.totalorder %s20, 0
      // Predicated region
      $region29: #{segloss_2d.1} parent=27 // pred_check
        %p235 = pneg %p234
      $region30: #{segloss_2d.1} parent=27 // pred_check_branch
        %237 = sbr.rel (%p235) target = $region32
      $region31: #{segloss_2d.1} parent=27 // pred_region
        %238 = vst [vmem:[%s230] sm:$0xf] 0.0
        %239 = vst [vmem:[%s230 + $0x4] sm:$0xf] 0.0
        %240 = vst [vmem:[%s230 + $0x8] sm:$0xf] 0.0
        %241 = vst [vmem:[%s233] sm:$0x1] 0.0
      $region32: #{segloss_2d.1} parent=27 // pred_fallthru
        _
      %v242 = vld [vmem:[%s217] sm:$0x3]
      %v243 = vld [vmem:[%s225] sm:$0x3]
      %s244 = scalar_lea.vmem %s217, 2
      %v245 = vld [vmem:[%s244] sm:$0x3]
      %s246 = scalar_lea.vmem %s225, 2
      %v247 = vld [vmem:[%s246] sm:$0x3]
      %v248 = vmax.f32 %v242, %v245
      %vm249 = vcmp.gt.f32.partialorder %v247, %v243
      %v250 = vsel %vm249, %v247, %v243
      %v251 = vsel %vm249, %v245, %v242
      %s252 = scalar_lea.vmem %s217, 4
      %v253 = vld [vmem:[%s252] sm:$0x3]
      %s254 = scalar_lea.vmem %s225, 4
      %v255 = vld [vmem:[%s254] sm:$0x3]
      %v256 = vmax.f32 %v248, %v253
      %vm257 = vcmp.gt.f32.partialorder %v255, %v250
      %v258 = vsel %vm257, %v255, %v250
      %v259 = vsel %vm257, %v253, %v251
      %s260 = scalar_lea.vmem %s217, 6
      %v261 = vld [vmem:[%s260] sm:$0x3]
      %s262 = scalar_lea.vmem %s225, 6
      %v263 = vld [vmem:[%s262] sm:$0x3]
      %v264 = vmax.f32 %v256, %v261
      %vm265 = vcmp.gt.f32.partialorder %v263, %v258
      %v266 = vsel %vm265, %v261, %v259
      %v267 = vsub.f32 %v242, %v264
      %v268 = vmul.f32 %v267, 1.442695
      %v269 = vpow.pop %v268
      %270 = vst [vmem:[#allocation2] sm:$0x3] %v269
      %v271 = vadd.f32 %v269, 0.0
      %v272 = vld [vmem:[%s225] sm:$0x3]
      %vm273 = vcmask 1041408
      %v274 = vsel %vm273, %v272, 0.0
      %v275 = vrot.slane %v274, 4
      %v276 = vadd.f32 %v274, %v275
      %v277 = vrot.slane %v276, 2
      %v278 = vadd.f32 %v276, %v277
      %v279 = vrot.slane %v278, 1
      %v280 = vadd.f32 %v278, %v279
      %v281 = vld [vmem:[%s244] sm:$0x3]
      %v282 = vsub.f32 %v281, %v264
      %v283 = vmul.f32 %v282, 1.442695
      %v284 = vpow.pop %v283
      %s285 = scalar_lea.vmem [#allocation2], 2
      %286 = vst [vmem:[%s285] sm:$0x3] %v284
      %v287 = vadd.f32 %v271, %v284
      %v288 = vld [vmem:[%s246] sm:$0x3]
      %v289 = vsel %vm273, %v288, 0.0
      %v290 = vrot.slane %v289, 4
      %v291 = vadd.f32 %v289, %v290
      %v292 = vrot.slane %v291, 2
      %v293 = vadd.f32 %v291, %v292
      %v294 = vrot.slane %v293, 1
      %v295 = vadd.f32 %v293, %v294
      %v296 = vld [vmem:[%s252] sm:$0x3]
      %v297 = vsub.f32 %v296, %v264
      %v298 = vmul.f32 %v297, 1.442695
      %v299 = vpow.pop %v298
      %s300 = scalar_lea.vmem [#allocation2], 4
      %301 = vst [vmem:[%s300] sm:$0x3] %v299
      %v302 = vadd.f32 %v287, %v299
      %v303 = vld [vmem:[%s254] sm:$0x3]
      %v304 = vsel %vm273, %v303, 0.0
      %v305 = vrot.slane %v304, 4
      %v306 = vadd.f32 %v304, %v305
      %v307 = vrot.slane %v306, 2
      %v308 = vadd.f32 %v306, %v307
      %v309 = vrot.slane %v308, 1
      %v310 = vadd.f32 %v308, %v309
      %v311 = vld [vmem:[%s260] sm:$0x3]
      %v312 = vsub.f32 %v311, %v264
      %v313 = vmul.f32 %v312, 1.442695
      %v314 = vpow.pop %v313
      %s315 = scalar_lea.vmem [#allocation2], 6
      %316 = vst [vmem:[%s315] sm:$0x3] %v314
      %v317 = vadd.f32 %v302, %v314
      %v318 = vld [vmem:[%s262] sm:$0x3]
      %v319 = vsel %vm273, %v318, 0.0
      %v320 = vrot.slane %v319, 4
      %v321 = vadd.f32 %v319, %v320
      %v322 = vrot.slane %v321, 2
      %v323 = vadd.f32 %v321, %v322
      %v324 = vrot.slane %v323, 1
      %v325 = vadd.f32 %v323, %v324
      %v326 = vlog2.pop %v317
      %v327 = vmul.f32 %v326, 0.6931472
      %v328 = vadd.f32 %v264, %v327
      %v329 = vrcp.pop %v317
      %v330 = vsub.f32 %v328, %v266
      %v331 = vsel %vm273, %v330, 0.0
      %v332 = vrot.slane %v331, 4
      %v333 = vadd.f32 %v331, %v332
      %v334 = vrot.slane %v333, 2
      %v335 = vadd.f32 %v333, %v334
      %v336 = vrot.slane %v335, 1
      %v337 = vadd.f32 %v335, %v336
      %v338 = vld [vmem:[#allocation2] sm:$0x3]
      %v339 = vmul.f32 %v338, %v329
      %v340 = vld [vmem:[%s225] sm:$0x3]
      %v341 = vmul.f32 %v339, %v340
      %v342 = vsel %vm273, %v341, 0.0
      %v343 = vrot.slane %v342, 4
      %v344 = vadd.f32 %v342, %v343
      %v345 = vrot.slane %v344, 2
      %v346 = vadd.f32 %v344, %v345
      %v347 = vrot.slane %v346, 1
      %v348 = vadd.f32 %v346, %v347
      %v349 = vsel %vm273, %v339, 0.0
      %v350 = vrot.slane %v349, 4
      %v351 = vadd.f32 %v349, %v350
      %v352 = vrot.slane %v351, 2
      %v353 = vadd.f32 %v351, %v352
      %v354 = vrot.slane %v353, 1
      %v355 = vadd.f32 %v353, %v354
      %v356 = vld [vmem:[%s285] sm:$0x3]
      %v357 = vmul.f32 %v356, %v329
      %v358 = vld [vmem:[%s246] sm:$0x3]
      %v359 = vmul.f32 %v357, %v358
      %v360 = vsel %vm273, %v359, 0.0
      %v361 = vrot.slane %v360, 4
      %v362 = vadd.f32 %v360, %v361
      %v363 = vrot.slane %v362, 2
      %v364 = vadd.f32 %v362, %v363
      %v365 = vrot.slane %v364, 1
      %v366 = vadd.f32 %v364, %v365
      %v367 = vsel %vm273, %v357, 0.0
      %v368 = vrot.slane %v367, 4
      %v369 = vadd.f32 %v367, %v368
      %v370 = vrot.slane %v369, 2
      %v371 = vadd.f32 %v369, %v370
      %v372 = vrot.slane %v371, 1
      %v373 = vadd.f32 %v371, %v372
      %v374 = vld [vmem:[%s300] sm:$0x3]
      %v375 = vmul.f32 %v374, %v329
      %v376 = vld [vmem:[%s254] sm:$0x3]
      %v377 = vmul.f32 %v375, %v376
      %v378 = vsel %vm273, %v377, 0.0
      %v379 = vrot.slane %v378, 4
      %v380 = vadd.f32 %v378, %v379
      %v381 = vrot.slane %v380, 2
      %v382 = vadd.f32 %v380, %v381
      %v383 = vrot.slane %v382, 1
      %v384 = vadd.f32 %v382, %v383
      %v385 = vsel %vm273, %v375, 0.0
      %v386 = vrot.slane %v385, 4
      %v387 = vadd.f32 %v385, %v386
      %v388 = vrot.slane %v387, 2
      %v389 = vadd.f32 %v387, %v388
      %v390 = vrot.slane %v389, 1
      %v391 = vadd.f32 %v389, %v390
      %v392 = vld [vmem:[%s315] sm:$0x3]
      %v393 = vmul.f32 %v392, %v329
      %v394 = vmul.f32 %v393, %v318
      %v395 = vsel %vm273, %v394, 0.0
      %v396 = vrot.slane %v395, 4
      %v397 = vadd.f32 %v395, %v396
      %v398 = vrot.slane %v397, 2
      %v399 = vadd.f32 %v397, %v398
      %v400 = vrot.slane %v399, 1
      %v401 = vadd.f32 %v399, %v400
      %v402 = vsel %vm273, %v393, 0.0
      %v403 = vrot.slane %v402, 4
      %v404 = vadd.f32 %v402, %v403
      %v405 = vrot.slane %v404, 2
      %v406 = vadd.f32 %v404, %v405
      %v407 = vrot.slane %v406, 1
      %v408 = vadd.f32 %v406, %v407
      %vm409 = vcmask 1040384
      %v410 = vsel %vm409, %v348, %v366
      %v411 = vsel %vm273, %v410, %v384
      %vm412 = vcmask 1042432
      %v413 = vsel %vm412, %v411, %v401
      %v414 = vsel %vm409, %v355, %v373
      %v415 = vsel %vm273, %v414, %v391
      %v416 = vsel %vm412, %v415, %v408
      %v417 = vsel %vm409, %v280, %v295
      %v418 = vsel %vm273, %v417, %v310
      %v419 = vsel %vm412, %v418, %v325
      %v420 = vld [vmem:[%s230] sm:$0xf]
      %v421 = vld [vmem:[%s230 + $0x4] sm:$0xf]
      %v422 = vld [vmem:[%s230 + $0x8] sm:$0xf]
      %v423 = vadd.f32 %v420, %v413
      %v424 = vadd.f32 %v421, %v416
      %v425 = vadd.f32 %v422, %v419
      %426 = vst [vmem:[%s230] sm:$0xf] %v423
      %427 = vst [vmem:[%s230 + $0x4] sm:$0xf] %v424
      %428 = vst [vmem:[%s230 + $0x8] sm:$0xf] %v425
      %v429 = vld [vmem:[%s233] sm:$0x1]
      %v430 = vadd.f32 %v429, %v337
      %431 = vst [vmem:[%s233] sm:$0x1] %v430
      %p432 = scmp.lt.s32.totalorder %s19, 1
      %s433 = scalar_select %p432, %s19, 1
      %s434 = smul.addr %s433, 3
      %s435 = smul.addr %s434, 4
      %s436 = scalar_lea.vmem %s2, %s435
      %p437 = scmp.lt.s32.totalorder %s19, 1
      %s438 = scalar_select %p437, %s19, 1
      %s439 = scalar_lea.vmem %s3, %s438
      // Predicated region
      $region33: #{segloss_2d.1} parent=27 // pred_check
        %p440 = pneg %p101
      $region34: #{segloss_2d.1} parent=27 // pred_check_branch
        %442 = sbr.rel (%p440) target = $region36
      $region35: #{segloss_2d.1} parent=27 // pred_region
        _
      $region36: #{segloss_2d.1} parent=27 // pred_fallthru
        _
      // Predicated region
      $region37: #{segloss_2d.1} parent=27 // pred_check
        %p443 = pneg %p127
      $region38: #{segloss_2d.1} parent=27 // pred_check_branch
        %445 = sbr.rel (%p443) target = $region40
      $region39: #{segloss_2d.1} parent=27 // pred_region
        _
      $region40: #{segloss_2d.1} parent=27 // pred_fallthru
        _
    $region28: #{segloss_2d.1} parent=5 // pred_fallthru
      _
    %p446 = scmp.le.s32.totalorder 2, %s10
    // Predicated region
    $region41: #{segloss_2d.1} parent=5 // pred_check
      %p447 = pneg %p446
    $region42: #{segloss_2d.1} parent=5 // pred_check_branch
      %449 = sbr.rel (%p447) target = $region44
    $region43: #{segloss_2d.1} parent=5 // pred_region
      %s450 = ssub.s32 %s10, 2
      // Predicated region
      $region45: #{segloss_2d.1} parent=43 // pred_check
        %p451 = pneg %p107
      $region46: #{segloss_2d.1} parent=43 // pred_check_branch
        %453 = sbr.rel (%p451) target = $region48
      $region47: #{segloss_2d.1} parent=43 // pred_region
        %p454 = scmp.lt.s32.totalorder %s21, 1
        %s455 = scalar_select %p454, %s21, 1
        %s456 = smul.addr %s455, 3
        %s457 = smul.addr %s456, 4
        %s458 = scalar_lea.vmem %s2, %s457
      $region48: #{segloss_2d.1} parent=43 // pred_fallthru
        _
      // Predicated region
      $region49: #{segloss_2d.1} parent=43 // pred_check
        %p459 = pneg %p133
      $region50: #{segloss_2d.1} parent=43 // pred_check_branch
        %461 = sbr.rel (%p459) target = $region52
      $region51: #{segloss_2d.1} parent=43 // pred_region
        %p462 = scmp.lt.s32.totalorder %s21, 1
        %s463 = scalar_select %p462, %s21, 1
        %s464 = scalar_lea.vmem %s3, %s463
      $region52: #{segloss_2d.1} parent=43 // pred_fallthru
        _
    $region44: #{segloss_2d.1} parent=5 // pred_fallthru
      _
  $region6: #{segloss_2d.1} parent=0 // loop_footer
    %s14 = sadd.s32 1, %s10
  $region7: #{segloss_2d.1} parent=0 // loop_footer_branch
    %9 = sbr.rel target = $region3
  $region8: #{segloss_2d.1} parent=0 // loop_exit
    _

</llo_original>
